<compile_context>
chip_gen: v6e
topology: v6e:2x2x1
jax: 0.10.0
libtpu: 0.0.40
codegen_flags: <defaults>
</compile_context>

<pallas_src>
import functools

import jax
import jax.numpy as jnp
from jax.experimental import pallas as pl
from jax.experimental.pallas import tpu as pltpu

SMOOTH = 1e-5

# Per-grid-step VMEM budget for the double-buffered input tiles.  Kept well
# under v7x's 32 MiB default scoped limit (64 MiB physical per TC).
_TILE_BUDGET_BYTES = 24 * 1024 * 1024
_VMEM_LIMIT_BYTES = 48 * 1024 * 1024


def _dice_stats_kernel(logits_ref, targets_ref, inter_ref, pred_ref, tgt_ref):
    """Accumulates per-(batch, class) dice statistics over spatial tiles.

    logits_ref : (1, C, TILE_S)  input dtype (f32 / bf16), VMEM
    targets_ref: (1, 1, TILE_S)  int32 class indices, VMEM
    inter_ref  : (1, 1, C) f32   sum_s probs * onehot   (output, VMEM-resident)
    pred_ref   : (1, 1, C) f32   sum_s probs            (output, VMEM-resident)
    tgt_ref    : (1, 1, C) f32   sum_s onehot           (output, VMEM-resident)
    """
    s_idx = pl.program_id(1)

    @pl.when(s_idx == 0)
    def _init():
        inter_ref[...] = jnp.zeros_like(inter_ref)
        pred_ref[...] = jnp.zeros_like(pred_ref)
        tgt_ref[...] = jnp.zeros_like(tgt_ref)

    logits = logits_ref[...].astype(jnp.float32)           # (1, C, T)
    targets = targets_ref[...]                             # (1, 1, T) int32
    _, num_classes, _ = logits.shape

    # Numerically stable softmax over the class axis; a single reciprocal per
    # pixel instead of one divide per (pixel, class).  Exact reciprocal keeps
    # the 1e-5 match against the reference.
    m = jnp.max(logits, axis=1, keepdims=True)              # (1, 1, T)
    e = jnp.exp(logits - m)                                 # (1, C, T)
    denom = jnp.sum(e, axis=1, keepdims=True)               # (1, 1, T)
    inv = pl.reciprocal(denom, approx=False)                # (1, 1, T)
    probs = e * inv                                         # (1, C, T)

    # Fused one-hot for all classes at once (replaces the per-class loop).
    cls_iota = jax.lax.broadcasted_iota(jnp.int32, probs.shape, 1)
    onehot = (cls_iota == targets).astype(jnp.float32)      # (1, C, T)

    inter_ref[...] += jnp.sum(probs * onehot, axis=2).reshape(1, 1, num_classes)
    pred_ref[...] += jnp.sum(probs, axis=2).reshape(1, 1, num_classes)
    tgt_ref[...] += jnp.sum(onehot, axis=2).reshape(1, 1, num_classes)


def _pick_tile_s(num_classes, spatial, logits_itemsize):
    """Largest spatial tile (multiple of 128, divides S) inside the VMEM budget."""
    if spatial % 128 != 0:
        return spatial  # odd spatial size: fall back to one full-width block
    per_lane_bytes = 2 * (num_classes * logits_itemsize + 4)  # double-buffered
    max_tile = max(_TILE_BUDGET_BYTES // per_lane_bytes, 128)
    tile = min(spatial, (max_tile // 128) * 128)
    while spatial % tile != 0:
        tile -= 128
    return tile


@functools.partial(jax.jit, static_argnames=("smooth",))
def dice_loss(logits_nchw: jax.Array, targets_nhw: jax.Array,
              smooth: float = SMOOTH) -> jax.Array:
    """Multi-class soft Dice loss matching DiceLoss.forward semantics.

    logits_nchw: (B, C, H, W) float (f32 or bf16 -- passed through unchanged)
    targets_nhw: (B, H, W) integer class indices in [0, C)
    returns: scalar float32 loss
    """
    B, C, H, W = logits_nchw.shape
    S = H * W
    logits = logits_nchw.reshape(B, C, S)                   # keep original dtype
    targets = targets_nhw.reshape(B, 1, S).astype(jnp.int32)
    # TODO(synk): int8 targets would shave a further 4x off the (small) target
    # HBM traffic; kept int32 here for layout robustness.

    tile_s = _pick_tile_s(C, S, logits.dtype.itemsize)
    num_s_tiles = S // tile_s

    stat_shape = jax.ShapeDtypeStruct((B, 1, C), jnp.float32)
    stat_spec = pl.BlockSpec((1, 1, C), lambda b, s: (b, 0, 0))

    inter, pred_sum, tgt_sum = pl.pallas_call(
        _dice_stats_kernel,
        out_shape=(stat_shape, stat_shape, stat_shape),
        grid=(B, num_s_tiles),
        in_specs=[
            pl.BlockSpec((1, C, tile_s), lambda b, s: (b, 0, s)),
            pl.BlockSpec((1, 1, tile_s), lambda b, s: (b, 0, s)),
        ],
        out_specs=(stat_spec, stat_spec, stat_spec),
        compiler_params=pltpu.CompilerParams(
            dimension_semantics=("parallel", "arbitrary"),
            vmem_limit_bytes=_VMEM_LIMIT_BYTES,
        ),
    )(logits, targets)

    inter = inter[:, 0, :]                                   # (B, C)
    union = pred_sum[:, 0, :] + tgt_sum[:, 0, :]             # (B, C)
    dice = (2.0 * inter + smooth) / (union + smooth)         # (B, C)
    # PyTorch: mean_cls(1 - mean_batch(dice)) == 1 - mean over all (b, c).
    return 1.0 - jnp.mean(dice)


def _reference_dice_loss(logits_nchw, targets_nhw, smooth=SMOOTH):
    # Pure-JAX reference mirroring the PyTorch module.
    B, C, H, W = logits_nchw.shape
    probs = jax.nn.softmax(logits_nchw.astype(jnp.float32), axis=1)
    one_hot = jax.nn.one_hot(targets_nhw, C, dtype=jnp.float32)      # (B,H,W,C)
    one_hot = jnp.transpose(one_hot, (0, 3, 1, 2))                   # (B,C,H,W)
    scores = []
    for cls in range(C):
        pred_cls = probs[:, cls, :, :]
        target_cls = one_hot[:, cls, :, :]
        inter = jnp.sum(pred_cls * target_cls, axis=(1, 2))
        union = jnp.sum(pred_cls, axis=(1, 2)) + jnp.sum(target_cls, axis=(1, 2))
        dice = (2.0 * inter + smooth) / (union + smooth)
        scores.append(1.0 - jnp.mean(dice))
    return jnp.mean(jnp.stack(scores))


if __name__ == "__main__":
    key = jax.random.PRNGKey(0)
    k_logits, k_targets = jax.random.split(key)

    B, C, H, W = 2, 4, 16, 16
    logits = jax.random.normal(k_logits, (B, C, H, W), dtype=jnp.float32)
    targets = jax.random.randint(k_targets, (B, H, W), 0, C, dtype=jnp.int32)

    # f32 logits path.
    loss = jax.block_until_ready(dice_loss(logits, targets))
    ref = jax.block_until_ready(_reference_dice_loss(logits, targets))
    assert jnp.allclose(loss, ref, atol=1e-5, rtol=1e-5), (loss, ref)

    # bf16 logits pass straight through (half the HBM bytes); the kernel
    # upcasts per tile, so an f32 reference on the same rounded values must
    # still match tightly.
    logits_bf16 = logits.astype(jnp.bfloat16)
    loss_bf16 = jax.block_until_ready(dice_loss(logits_bf16, targets))
    ref_bf16 = jax.block_until_ready(
        _reference_dice_loss(logits_bf16.astype(jnp.float32), targets))
    assert jnp.allclose(loss_bf16, ref_bf16, atol=1e-4, rtol=1e-4), (loss_bf16, ref_bf16)

    print("KERNEL_OK")
</pallas_src>

<mosaic_0001>
module attributes {stable_mosaic.version = 11 : i64} {
  func.func @_dice_stats_kernel(%arg0: i32, %arg1: i32, %arg2: memref<1x4x256xf32, #tpu.memory_space<vmem>>, %arg3: memref<1x1x256xi32, #tpu.memory_space<vmem>>, %arg4: memref<1x1x4xf32, #tpu.memory_space<vmem>>, %arg5: memref<1x1x4xf32, #tpu.memory_space<vmem>>, %arg6: memref<1x1x4xf32, #tpu.memory_space<vmem>>) attributes {dimension_semantics = [#tpu.dimension_semantics<parallel>, #tpu.dimension_semantics<arbitrary>], iteration_bounds = array<i64: 2, 1>, scalar_prefetch = 0 : i64, scratch_operands = 0 : i64, tpu.core_type = #tpu.core_type<tc>, window_params = [{transform_indices = @transform_0, window_bounds = array<i64: 1, 4, 256>}, {transform_indices = @transform_1, window_bounds = array<i64: 1, 1, 256>}, {transform_indices = @transform_2, window_bounds = array<i64: 1, 1, 4>}, {transform_indices = @transform_3, window_bounds = array<i64: 1, 1, 4>}, {transform_indices = @transform_4, window_bounds = array<i64: 1, 1, 4>}]} {
    %c0_i32 = arith.constant 0 : i32
    %0 = arith.cmpi eq, %arg1, %c0_i32 : i32
    %1 = arith.extui %0 : i1 to i32
    %c0_i32_0 = arith.constant 0 : i32
    %2 = arith.cmpi ne, %1, %c0_i32_0 : i32
    scf.if %2 {
      %cst_28 = arith.constant 0.000000e+00 : f32
      %36 = vector.broadcast %cst_28 : f32 to vector<1x1x4xf32>
      %c0_29 = arith.constant 0 : index
      %c0_30 = arith.constant 0 : index
      %c0_31 = arith.constant 0 : index
      %37 = vector.load %arg4[%c0_29, %c0_30, %c0_31] : memref<1x1x4xf32, #tpu.memory_space<vmem>>, vector<1x1x4xf32>
      tpu.vector_store %arg4[%c0_29, %c0_30, %c0_31], %36 {strides = array<i32>} : memref<1x1x4xf32, #tpu.memory_space<vmem>>, vector<1x1x4xf32>,
      %cst_32 = arith.constant 0.000000e+00 : f32
      %38 = vector.broadcast %cst_32 : f32 to vector<1x1x4xf32>
      %c0_33 = arith.constant 0 : index
      %c0_34 = arith.constant 0 : index
      %c0_35 = arith.constant 0 : index
      %39 = vector.load %arg5[%c0_33, %c0_34, %c0_35] : memref<1x1x4xf32, #tpu.memory_space<vmem>>, vector<1x1x4xf32>
      tpu.vector_store %arg5[%c0_33, %c0_34, %c0_35], %38 {strides = array<i32>} : memref<1x1x4xf32, #tpu.memory_space<vmem>>, vector<1x1x4xf32>,
      %cst_36 = arith.constant 0.000000e+00 : f32
      %40 = vector.broadcast %cst_36 : f32 to vector<1x1x4xf32>
      %c0_37 = arith.constant 0 : index
      %c0_38 = arith.constant 0 : index
      %c0_39 = arith.constant 0 : index
      %41 = vector.load %arg6[%c0_37, %c0_38, %c0_39] : memref<1x1x4xf32, #tpu.memory_space<vmem>>, vector<1x1x4xf32>
      tpu.vector_store %arg6[%c0_37, %c0_38, %c0_39], %40 {strides = array<i32>} : memref<1x1x4xf32, #tpu.memory_space<vmem>>, vector<1x1x4xf32>,
    } else {
    }
    %c0 = arith.constant 0 : index
    %c0_1 = arith.constant 0 : index
    %c0_2 = arith.constant 0 : index
    %3 = vector.load %arg2[%c0, %c0_1, %c0_2] : memref<1x4x256xf32, #tpu.memory_space<vmem>>, vector<1x4x256xf32>
    %c0_3 = arith.constant 0 : index
    %c0_4 = arith.constant 0 : index
    %c0_5 = arith.constant 0 : index
    %4 = vector.load %arg3[%c0_3, %c0_4, %c0_5] : memref<1x1x256xi32, #tpu.memory_space<vmem>>, vector<1x1x256xi32>
    %cst = arith.constant dense<0xFF800000> : vector<1x256xf32>
    %5 = vector.multi_reduction <maximumf>, %3, %cst [1] : vector<1x4x256xf32> to vector<1x256xf32>
    %6 = vector.shape_cast %5 : vector<1x256xf32> to vector<1x1x256xf32>
    %7 = vector.broadcast %6 : vector<1x1x256xf32> to vector<1x4x256xf32>
    %8 = arith.subf %3, %7 : vector<1x4x256xf32>
    %9 = math.exp %8 : vector<1x4x256xf32>
    %cst_6 = arith.constant dense<0.000000e+00> : vector<1x256xf32>
    %10 = vector.multi_reduction <add>, %9, %cst_6 [1] : vector<1x4x256xf32> to vector<1x256xf32>
    %11 = vector.shape_cast %10 : vector<1x256xf32> to vector<1x1x256xf32>
    %12 = tpu.reciprocal %11 : vector<1x1x256xf32> -> vector<1x1x256xf32>
    %13 = vector.broadcast %12 : vector<1x1x256xf32> to vector<1x4x256xf32>
    %14 = arith.mulf %9, %13 : vector<1x4x256xf32>
    %15 = tpu.iota {dimensions = array<i32: 1>} : vector<1x4x256xi32>
    %16 = vector.broadcast %4 : vector<1x1x256xi32> to vector<1x4x256xi32>
    %17 = arith.cmpi eq, %15, %16 : vector<1x4x256xi32>
    %18 = arith.extui %17 : vector<1x4x256xi1> to vector<1x4x256xi32>
    %19 = arith.sitofp %18 : vector<1x4x256xi32> to vector<1x4x256xf32>
    %c0_7 = arith.constant 0 : index
    %c0_8 = arith.constant 0 : index
    %c0_9 = arith.constant 0 : index
    %20 = vector.load %arg4[%c0_7, %c0_8, %c0_9] : memref<1x1x4xf32, #tpu.memory_space<vmem>>, vector<1x1x4xf32>
    %21 = arith.mulf %14, %19 : vector<1x4x256xf32>
    %cst_10 = arith.constant dense<0.000000e+00> : vector<1x4xf32>
    %22 = vector.multi_reduction <add>, %21, %cst_10 [2] : vector<1x4x256xf32> to vector<1x4xf32>
    %23 = vector.shape_cast %22 : vector<1x4xf32> to vector<1x1x4xf32>
    %24 = arith.addf %20, %23 : vector<1x1x4xf32>
    %c0_11 = arith.constant 0 : index
    %c0_12 = arith.constant 0 : index
    %c0_13 = arith.constant 0 : index
    %25 = vector.load %arg4[%c0_11, %c0_12, %c0_13] : memref<1x1x4xf32, #tpu.memory_space<vmem>>, vector<1x1x4xf32>
    tpu.vector_store %arg4[%c0_11, %c0_12, %c0_13], %24 {strides = array<i32>} : memref<1x1x4xf32, #tpu.memory_space<vmem>>, vector<1x1x4xf32>,
    %c0_14 = arith.constant 0 : index
    %c0_15 = arith.constant 0 : index
    %c0_16 = arith.constant 0 : index
    %26 = vector.load %arg5[%c0_14, %c0_15, %c0_16] : memref<1x1x4xf32, #tpu.memory_space<vmem>>, vector<1x1x4xf32>
    %cst_17 = arith.constant dense<0.000000e+00> : vector<1x4xf32>
    %27 = vector.multi_reduction <add>, %14, %cst_17 [2] : vector<1x4x256xf32> to vector<1x4xf32>
    %28 = vector.shape_cast %27 : vector<1x4xf32> to vector<1x1x4xf32>
    %29 = arith.addf %26, %28 : vector<1x1x4xf32>
    %c0_18 = arith.constant 0 : index
    %c0_19 = arith.constant 0 : index
    %c0_20 = arith.constant 0 : index
    %30 = vector.load %arg5[%c0_18, %c0_19, %c0_20] : memref<1x1x4xf32, #tpu.memory_space<vmem>>, vector<1x1x4xf32>
    tpu.vector_store %arg5[%c0_18, %c0_19, %c0_20], %29 {strides = array<i32>} : memref<1x1x4xf32, #tpu.memory_space<vmem>>, vector<1x1x4xf32>,
    %c0_21 = arith.constant 0 : index
    %c0_22 = arith.constant 0 : index
    %c0_23 = arith.constant 0 : index
    %31 = vector.load %arg6[%c0_21, %c0_22, %c0_23] : memref<1x1x4xf32, #tpu.memory_space<vmem>>, vector<1x1x4xf32>
    %cst_24 = arith.constant dense<0.000000e+00> : vector<1x4xf32>
    %32 = vector.multi_reduction <add>, %19, %cst_24 [2] : vector<1x4x256xf32> to vector<1x4xf32>
    %33 = vector.shape_cast %32 : vector<1x4xf32> to vector<1x1x4xf32>
    %34 = arith.addf %31, %33 : vector<1x1x4xf32>
    %c0_25 = arith.constant 0 : index
    %c0_26 = arith.constant 0 : index
    %c0_27 = arith.constant 0 : index
    %35 = vector.load %arg6[%c0_25, %c0_26, %c0_27] : memref<1x1x4xf32, #tpu.memory_space<vmem>>, vector<1x1x4xf32>
    tpu.vector_store %arg6[%c0_25, %c0_26, %c0_27], %34 {strides = array<i32>} : memref<1x1x4xf32, #tpu.memory_space<vmem>>, vector<1x1x4xf32>,
    return
  }
  func.func @transform_0(%arg0: i32, %arg1: i32) -> (i32, i32, i32) {
    %c0_i32 = arith.constant 0 : i32
    %c0_i32_0 = arith.constant 0 : i32
    return %arg0, %c0_i32, %arg1 : i32, i32, i32
  }
  func.func @transform_1(%arg0: i32, %arg1: i32) -> (i32, i32, i32) {
    %c0_i32 = arith.constant 0 : i32
    %c0_i32_0 = arith.constant 0 : i32
    return %arg0, %c0_i32, %arg1 : i32, i32, i32
  }
  func.func @transform_2(%arg0: i32, %arg1: i32) -> (i32, i32, i32) {
    %c0_i32 = arith.constant 0 : i32
    %c0_i32_0 = arith.constant 0 : i32
    %c0_i32_1 = arith.constant 0 : i32
    return %arg0, %c0_i32, %c0_i32_0 : i32, i32, i32
  }
  func.func @transform_3(%arg0: i32, %arg1: i32) -> (i32, i32, i32) {
    %c0_i32 = arith.constant 0 : i32
    %c0_i32_0 = arith.constant 0 : i32
    %c0_i32_1 = arith.constant 0 : i32
    return %arg0, %c0_i32, %c0_i32_0 : i32, i32, i32
  }
  func.func @transform_4(%arg0: i32, %arg1: i32) -> (i32, i32, i32) {
    %c0_i32 = arith.constant 0 : i32
    %c0_i32_0 = arith.constant 0 : i32
    %c0_i32_1 = arith.constant 0 : i32
    return %arg0, %c0_i32, %c0_i32_0 : i32, i32, i32
  }
}

</mosaic_0001>

<llo_original>
// kernel: dice_loss.1
$region0: #{dice_loss.1}
  #allocation0 [shape = 'u32[]', space=smem, size = 0x4, offset = 0x4, fixed_abs, tag = 'smem constant byte address 0x4 - core index']
  #allocation1 [shape = 'u32[144,128]{1,0:T(1,128)}', space=vmem, size = 0x12000, scoped, tag = 'internal scratch']
  %s0 = inlined_call_operand.vmem [shape: f32[2,4,256], index: 0, kind: input, shape index: {}]
  %s1 = inlined_call_operand.vmem [shape: s32[2,1,256], index: 1, kind: input, shape index: {}]
  %s2 = inlined_call_operand.vmem [shape: f32[2,1,4], index: 2, kind: output, shape index: {0}]
  %s3 = inlined_call_operand.vmem [shape: f32[2,1,4], index: 3, kind: output, shape index: {1}]
  %s4 = inlined_call_operand.vmem [shape: f32[2,1,4], index: 4, kind: output, shape index: {2}]
  %5 = xla_tuple %s2, %s3, %s4
  %s6 = sld [smem:[#allocation0]]
  $region61: #{dice_loss.1} parent=0
    _
  %s8 = ssub.s32 1, %s6
  %s9 = scalar_select 0, %s8, %s6
  loop: start=0, step=1, limit=4
  $region2: #{dice_loss.1} parent=0 // loop_pre_header
    _
  $region3: #{dice_loss.1} parent=0 // loop_header
    %s11 = sphi 0, %s15
    %p12 = scmp.ge.s32.totalorder %s11, 4
    %s18 = sphi 0, %s30
    %s19 = sphi 0, %s26
    %s20 = sphi 0, %s18
    %s21 = sphi 0, %s19
    %s22 = sphi 0, %s20
    %s23 = sphi 0, %s21
    %s35 = sphi 0, %s37
    %s38 = sphi 0, %s35
    %s39 = sphi 0, %s38
    %s55 = sphi 0, %s39
    %s63 = sphi 0, %s65
    %s66 = sphi 0, %s63
    %s67 = sphi 0, %s66
    %s83 = sphi 0, %s67
    %s89 = sphi 0, %s91
    %s92 = sphi 0, %s89
    %s93 = sphi 0, %s92
    %s109 = sphi 0, %s93
    %s115 = sphi 0, %s117
    %s118 = sphi 0, %s115
    %s119 = sphi 0, %s118
    %s135 = sphi 0, %s119
    %s141 = sphi 0, %s143
    %s144 = sphi 0, %s141
    %s145 = sphi 0, %s144
    %s161 = sphi 0, %s145
  $region4: #{dice_loss.1} parent=0 // loop_header_branch
    %14 = sbr.rel (%p12) target = $region8
  $region5: #{dice_loss.1} parent=0 // loop_body
    %s16 = ssub.s32 %s11, 1
    %s17 = ssub.s32 %s11, 2
    %s24 = sadd.s32 1, %s19
    %p25 = scmp.ge.s32.totalorder %s24, 1
    %s26 = scalar_select %p25, 0, %s24
    %s27 = sadd.s32 1, %s18
    %s28 = scalar_select %p25, %s27, %s18
    %p29 = scmp.ge.s32.totalorder %s28, 2
    %s30 = scalar_select %p29, 0, %s28
    %s31 = ssub.s32 %s18, %s30
    %s32 = ssub.s32 %s19, %s26
    %s33 = sor.u32 %s31, %s32
    %p34 = scmp.eq.s32.totalorder %s33, 0
    %s36 = sadd.s32 %s35, 1
    %s37 = scalar_select %p34, %s35, %s36
    %p40 = pneg %p34
    %p41 = scmp.eq.s32.totalorder %s11, 1
    %p42 = por %p40, %p41
    %p43 = scmp.ne.s32.totalorder %s35, %s38
    %p44 = scmp.eq.s32.totalorder %s11, 0
    %p45 = por %p43, %p44
    %p46 = scmp.ne.s32.totalorder %s35, %s38
    %p47 = scmp.eq.s32.totalorder %s16, 1
    %p48 = por %p46, %p47
    %p49 = scmp.ne.s32.totalorder %s38, %s39
    %p50 = scmp.eq.s32.totalorder %s16, 0
    %p51 = por %p49, %p50
    %p52 = scmp.ne.s32.totalorder %s38, %s39
    %p53 = scmp.eq.s32.totalorder %s17, 1
    %p54 = por %p52, %p53
    %p56 = scmp.ne.s32.totalorder %s39, %s55
    %p57 = scmp.eq.s32.totalorder %s17, 0
    %p58 = por %p56, %p57
    %s59 = ssub.s32 %s18, %s30
    %s60 = ssub.s32 %s19, %s26
    %s61 = sor.u32 %s59, %s60
    %p62 = scmp.eq.s32.totalorder %s61, 0
    %s64 = sadd.s32 %s63, 1
    %s65 = scalar_select %p62, %s63, %s64
    %p68 = pneg %p62
    %p69 = scmp.eq.s32.totalorder %s11, 1
    %p70 = por %p68, %p69
    %p71 = scmp.ne.s32.totalorder %s63, %s66
    %p72 = scmp.eq.s32.totalorder %s11, 0
    %p73 = por %p71, %p72
    %p74 = scmp.ne.s32.totalorder %s63, %s66
    %p75 = scmp.eq.s32.totalorder %s16, 1
    %p76 = por %p74, %p75
    %p77 = scmp.ne.s32.totalorder %s66, %s67
    %p78 = scmp.eq.s32.totalorder %s16, 0
    %p79 = por %p77, %p78
    %p80 = scmp.ne.s32.totalorder %s66, %s67
    %p81 = scmp.eq.s32.totalorder %s17, 1
    %p82 = por %p80, %p81
    %p84 = scmp.ne.s32.totalorder %s67, %s83
    %p85 = scmp.eq.s32.totalorder %s17, 0
    %p86 = por %p84, %p85
    %s87 = ssub.s32 %s18, %s30
    %p88 = scmp.eq.s32.totalorder %s87, 0
    %s90 = sadd.s32 %s89, 1
    %s91 = scalar_select %p88, %s89, %s90
    %p94 = pneg %p88
    %p95 = scmp.eq.s32.totalorder %s11, 1
    %p96 = por %p94, %p95
    %p97 = scmp.ne.s32.totalorder %s89, %s92
    %p98 = scmp.eq.s32.totalorder %s11, 0
    %p99 = por %p97, %p98
    %p100 = scmp.ne.s32.totalorder %s89, %s92
    %p101 = scmp.eq.s32.totalorder %s16, 1
    %p102 = por %p100, %p101
    %p103 = scmp.ne.s32.totalorder %s92, %s93
    %p104 = scmp.eq.s32.totalorder %s16, 0
    %p105 = por %p103, %p104
    %p106 = scmp.ne.s32.totalorder %s92, %s93
    %p107 = scmp.eq.s32.totalorder %s17, 1
    %p108 = por %p106, %p107
    %p110 = scmp.ne.s32.totalorder %s93, %s109
    %p111 = scmp.eq.s32.totalorder %s17, 0
    %p112 = por %p110, %p111
    %s113 = ssub.s32 %s18, %s30
    %p114 = scmp.eq.s32.totalorder %s113, 0
    %s116 = sadd.s32 %s115, 1
    %s117 = scalar_select %p114, %s115, %s116
    %p120 = pneg %p114
    %p121 = scmp.eq.s32.totalorder %s11, 1
    %p122 = por %p120, %p121
    %p123 = scmp.ne.s32.totalorder %s115, %s118
    %p124 = scmp.eq.s32.totalorder %s11, 0
    %p125 = por %p123, %p124
    %p126 = scmp.ne.s32.totalorder %s115, %s118
    %p127 = scmp.eq.s32.totalorder %s16, 1
    %p128 = por %p126, %p127
    %p129 = scmp.ne.s32.totalorder %s118, %s119
    %p130 = scmp.eq.s32.totalorder %s16, 0
    %p131 = por %p129, %p130
    %p132 = scmp.ne.s32.totalorder %s118, %s119
    %p133 = scmp.eq.s32.totalorder %s17, 1
    %p134 = por %p132, %p133
    %p136 = scmp.ne.s32.totalorder %s119, %s135
    %p137 = scmp.eq.s32.totalorder %s17, 0
    %p138 = por %p136, %p137
    %s139 = ssub.s32 %s18, %s30
    %p140 = scmp.eq.s32.totalorder %s139, 0
    %s142 = sadd.s32 %s141, 1
    %s143 = scalar_select %p140, %s141, %s142
    %p146 = pneg %p140
    %p147 = scmp.eq.s32.totalorder %s11, 1
    %p148 = por %p146, %p147
    %p149 = scmp.ne.s32.totalorder %s141, %s144
    %p150 = scmp.eq.s32.totalorder %s11, 0
    %p151 = por %p149, %p150
    %p152 = scmp.ne.s32.totalorder %s141, %s144
    %p153 = scmp.eq.s32.totalorder %s16, 1
    %p154 = por %p152, %p153
    %p155 = scmp.ne.s32.totalorder %s144, %s145
    %p156 = scmp.eq.s32.totalorder %s16, 0
    %p157 = por %p155, %p156
    %p158 = scmp.ne.s32.totalorder %s144, %s145
    %p159 = scmp.eq.s32.totalorder %s17, 1
    %p160 = por %p158, %p159
    %p162 = scmp.ne.s32.totalorder %s145, %s161
    %p163 = scmp.eq.s32.totalorder %s17, 0
    %p164 = por %p162, %p163
    %p165 = scmp.le.s32.totalorder 1, %s11
    %p166 = scmp.lt.s32.totalorder %s11, 3
    %p167 = pnand %p165, %p166
    %p168 = pneg %p167
    // Predicated region
    $region9: #{dice_loss.1} parent=5 // pred_check
      _
    $region10: #{dice_loss.1} parent=5 // pred_check_branch
      %170 = sbr.rel (%p167) target = $region12
    $region11: #{dice_loss.1} parent=5 // pred_region
      %s171 = ssub.s32 %s11, 1
    $region12: #{dice_loss.1} parent=5 // pred_fallthru
      _
    %p172 = scmp.lt.s32.totalorder %s11, 2
    // Predicated region
    $region13: #{dice_loss.1} parent=5 // pred_check
      %p173 = pneg %p172
    $region14: #{dice_loss.1} parent=5 // pred_check_branch
      %175 = sbr.rel (%p173) target = $region16
    $region15: #{dice_loss.1} parent=5 // pred_region
      // Predicated region
      $region17: #{dice_loss.1} parent=15 // pred_check
        %p176 = pneg %p45
      $region18: #{dice_loss.1} parent=15 // pred_check_branch
        %178 = sbr.rel (%p176) target = $region20
      $region19: #{dice_loss.1} parent=15 // pred_region
        %s179 = smul.u32 2, %s19
        %p180 = scmp.lt.s32.totalorder %s18, 1
        %s181 = scalar_select %p180, %s18, 1
        %p182 = scmp.lt.s32.totalorder %s179, 1
        %s183 = scalar_select %p182, %s179, 1
        %s184 = smul.addr %s181, 2
        %s185 = sadd.s32 %s183, %s184
        %s186 = smul.addr %s185, 4
        %s187 = scalar_lea.vmem %s0, %s186
        %s188 = smul.u32 2, %s19
      $region20: #{dice_loss.1} parent=15 // pred_fallthru
        _
      // Predicated region
      $region21: #{dice_loss.1} parent=15 // pred_check
        %p189 = pneg %p73
      $region22: #{dice_loss.1} parent=15 // pred_check_branch
        %191 = sbr.rel (%p189) target = $region24
      $region23: #{dice_loss.1} parent=15 // pred_region
        %s192 = smul.u32 2, %s19
        %p193 = scmp.lt.s32.totalorder %s18, 1
        %s194 = scalar_select %p193, %s18, 1
        %p195 = scmp.lt.s32.totalorder %s192, 1
        %s196 = scalar_select %p195, %s192, 1
        %s197 = smul.addr %s194, 2
        %s198 = sadd.s32 %s196, %s197
        %s199 = scalar_lea.vmem %s1, %s198
        %s200 = smul.u32 2, %s19
      $region24: #{dice_loss.1} parent=15 // pred_fallthru
        _
    $region16: #{dice_loss.1} parent=5 // pred_fallthru
      _
    %p201 = scmp.le.s32.totalorder 1, %s11
    %p202 = scmp.lt.s32.totalorder %s11, 3
    %p203 = pnand %p201, %p202
    %p204 = pneg %p203
    // Predicated region
    $region25: #{dice_loss.1} parent=5 // pred_check
      _
    $region26: #{dice_loss.1} parent=5 // pred_check_branch
      %206 = sbr.rel (%p203) target = $region28
    $region27: #{dice_loss.1} parent=5 // pred_region
      %s207 = ssub.s32 %s11, 1
      %s208 = smul.u32 2, %s21
      %p209 = scmp.lt.s32.totalorder %s20, 1
      %s210 = scalar_select %p209, %s20, 1
      %p211 = scmp.lt.s32.totalorder %s208, 1
      %s212 = scalar_select %p211, %s208, 1
      %s213 = smul.addr %s210, 2
      %s214 = sadd.s32 %s212, %s213
      %s215 = smul.addr %s214, 4
      %s216 = scalar_lea.vmem %s0, %s215
      %p217 = pneg %p51
      %p218 = pneg %p48
      %s219 = smul.u32 2, %s21
      %p220 = scmp.lt.s32.totalorder %s20, 1
      %s221 = scalar_select %p220, %s20, 1
      %p222 = scmp.lt.s32.totalorder %s219, 1
      %s223 = scalar_select %p222, %s219, 1
      %s224 = smul.addr %s221, 2
      %s225 = sadd.s32 %s223, %s224
      %s226 = scalar_lea.vmem %s1, %s225
      %p227 = pneg %p79
      %p228 = pneg %p76
      %p229 = pneg %p105
      %p230 = pneg %p102
      %p231 = scmp.lt.s32.totalorder %s20, 1
      %s232 = scalar_select %p231, %s20, 1
      %s233 = scalar_lea.vmem %s2, %s232
      %p234 = pneg %p131
      %p235 = pneg %p128
      %p236 = scmp.lt.s32.totalorder %s20, 1
      %s237 = scalar_select %p236, %s20, 1
      %s238 = scalar_lea.vmem %s3, %s237
      %p239 = pneg %p157
      %p240 = pneg %p154
      %p241 = scmp.lt.s32.totalorder %s20, 1
      %s242 = scalar_select %p241, %s20, 1
      %s243 = scalar_lea.vmem %s4, %s242
      %s244 = smul.u32 2, %s21
      %p245 = scmp.lt.s32.totalorder %s20, 1
      %s246 = scalar_select %p245, %s20, 1
      %p247 = scmp.lt.s32.totalorder %s244, 1
      %s248 = scalar_select %p247, %s244, 1
      %s249 = smul.addr %s246, 2
      %s250 = sadd.s32 %s248, %s249
      %s251 = smul.addr %s250, 4
      %s252 = scalar_lea.vmem %s0, %s251
      %s253 = smul.u32 2, %s21
      %s254 = smul.u32 2, %s21
      %p255 = scmp.lt.s32.totalorder %s20, 1
      %s256 = scalar_select %p255, %s20, 1
      %p257 = scmp.lt.s32.totalorder %s254, 1
      %s258 = scalar_select %p257, %s254, 1
      %s259 = smul.addr %s256, 2
      %s260 = sadd.s32 %s258, %s259
      %s261 = scalar_lea.vmem %s1, %s260
      %s262 = smul.u32 2, %s21
      %p263 = scmp.lt.s32.totalorder %s20, 1
      %s264 = scalar_select %p263, %s20, 1
      %s265 = scalar_lea.vmem %s2, %s264
      %p266 = scmp.lt.s32.totalorder %s20, 1
      %s267 = scalar_select %p266, %s20, 1
      %s268 = scalar_lea.vmem %s3, %s267
      %p269 = scmp.lt.s32.totalorder %s20, 1
      %s270 = scalar_select %p269, %s20, 1
      %s271 = scalar_lea.vmem %s4, %s270
      %p272 = scmp.eq.s32.totalorder %s21, 0
      // Predicated region
      $region29: #{dice_loss.1} parent=27 // pred_check
        %p273 = pneg %p272
      $region30: #{dice_loss.1} parent=27 // pred_check_branch
        %275 = sbr.rel (%p273) target = $region32
      $region31: #{dice_loss.1} parent=27 // pred_region
        %vm276 = vcmask 24576
        %277 = vst.msk [vmem:[%s265] sm:$0x1] %vm276, 0.0
        %278 = vst.msk [vmem:[%s268] sm:$0x1] %vm276, 0.0
        %279 = vst.msk [vmem:[%s271] sm:$0x1] %vm276, 0.0
      $region32: #{dice_loss.1} parent=27 // pred_fallthru
        _
      %v280 = vld [vmem:[%s252] sm:$0xff]
      %v281 = vld [vmem:[%s261] sm:$0x3]
      %v283 = vcombine.high %v280, %v280
      %vm285 = vcmask 1043456
      %v286 = vsel %vm285, %v280, -inf
      %v287 = vrot.slane %v286, 4
      %v288 = vmax.f32 %v286, %v287
      %v289 = vrot.slane %v288, 2
      %v290 = vmax.f32 %v288, %v289
      %v291 = vrot.slane %v290, 1
      %v292 = vmax.f32 %v290, %v291
      %v293 = vsel %vm285, %v283, -inf
      %v294 = vrot.slane %v293, 4
      %v295 = vmax.f32 %v293, %v294
      %v296 = vrot.slane %v295, 2
      %v297 = vmax.f32 %v295, %v296
      %v298 = vrot.slane %v297, 1
      %v299 = vmax.f32 %v297, %v298
      %v302 = vcombine.low %v292, %v299
      %v304 = vsub.f32 %v280, %v302
      %v305 = vmul.f32 %v304, 1.442695
      %v306 = vpow.pop %v305
      %v308 = vcombine.high %v306, %v306
      %v310 = vsel %vm285, %v306, 0.0
      %v311 = vrot.slane %v310, 4
      %v312 = vadd.f32 %v310, %v311
      %v313 = vrot.slane %v312, 2
      %v314 = vadd.f32 %v312, %v313
      %v315 = vrot.slane %v314, 1
      %v316 = vadd.f32 %v314, %v315
      %v317 = vsel %vm285, %v308, 0.0
      %v318 = vrot.slane %v317, 4
      %v319 = vadd.f32 %v317, %v318
      %v320 = vrot.slane %v319, 2
      %v321 = vadd.f32 %v319, %v320
      %v322 = vrot.slane %v321, 1
      %v323 = vadd.f32 %v321, %v322
      %v324 = vrcp.pop %v316
      %v325 = vrcp.pop %v323
      %v328 = vcombine.low %v324, %v325
      %v330 = vmul.f32 %v306, %v328
      %v331 = vlaneseq
      %v332 = vshrl.u32 %v331, 7
      %v333 = vlaneseq
      %v334 = vshrl.u32 %v333, 7
      %v335 = vsub.s32 0, %v334
      %v336 = vrot.slane %v281, %v335
      %v337 = vlaneseq
      %v338 = vshrl.u32 %v337, 7
      %v339 = vsub.s32 1, %v338
      %v340 = vrot.slane %v281, %v339
      %vm341 = vcmp.eq.s32.totalorder %v332, %v336
      %vm342 = vcmp.eq.s32.totalorder %v332, %v340
      %v343 = vsel %vm341, 1, 0
      %v344 = vsel %vm342, 1, 0
      %v345 = vcvt.s32.f32 %v343
      %v346 = vcvt.s32.f32 %v344
      %v347 = vld [vmem:[%s265] sm:$0x1]
      %v350 = vcombine.low %v345, %v346
      %v352 = vmul.f32 %v330, %v350
      %v354 = vcombine.high %v352, %v352
      %v356 = vsel %vm285, %v352, 0.0
      %v357 = vsel %vm285, %v354, 0.0
      %v358 = vadd.f32 %v356, %v357
      %359 = vadd.xlane.f32.xlu0 %v358
      %v360 = vpop.xlane.xlu0 %359
      %v362 = vlaneseq
      %v363 = vshrl.u32 %v362, 7
      %v364 = vsub.s32 0, %v363
      %v365 = vrot.slane %v360, %v364
      %v366 = vlaneseq
      %v367 = vshrl.u32 %v366, 7
      %v368 = vsub.s32 1, %v367
      %v369 = vrot.slane %v360, %v368
      %v370 = vlaneseq
      %v371 = vshrl.u32 %v370, 7
      %v372 = vsub.s32 2, %v371
      %v373 = vrot.slane %v360, %v372
      %v374 = vlaneseq
      %v375 = vshrl.u32 %v374, 7
      %v376 = vsub.s32 3, %v375
      %v377 = vrot.slane %v360, %v376
      %v378 = vcombine.low %v365, %v369
      %v379 = vcombine.low %v373, %v377
      %v381 = vunpack.c.l.s4 1966171168
      %v382 = vunpack.c.0.s8 %v381
      %v383 = vlaneseq
      %v384 = vshrl.u32 %v383, 7
      %v385 = vsub.s32 %v382, %v384
      %v386 = vrot.slane %v378, %v385
      %v388 = vunpack.c.l.s4 1966171168
      %v389 = vunpack.c.0.s8 %v388
      %v390 = vlaneseq
      %v391 = vshrl.u32 %v390, 7
      %v392 = vsub.s32 %v389, %v391
      %v393 = vrot.slane %v379, %v392
      %v394 = vcombine.low %v386, %v393
      %v396 = vunpack.c.l.s4 1966171168
      %v397 = vunpack.c.0.s8 %v396
      %v398 = vlaneseq
      %v399 = vshrl.u32 %v398, 7
      %v400 = vsub.s32 %v397, %v399
      %v401 = vrot.slane %v394, %v400
      %402 = vset.pattern.permute.xlu0 0
      %403 = vperm.xlu0 %402, %v401
      %v404 = vpop.permute.xlu0 %403
      %v405 = vlaneseq
      %v406 = vand.u32 %v405, 127
      %v407 = vlaneseq
      %v408 = vshrl.u32 %v407, 7
      %v409 = vsub.s32 %v406, %v408
      %v410 = vrot.slane %v404, %v409
      %v412 = vunpack.c.l.s4 1966171168
      %v413 = vunpack.c.0.s8 %v412
      %v414 = vlaneseq
      %v415 = vshrl.u32 %v414, 7
      %v416 = vsub.s32 %v413, %v415
      %v417 = vrot.slane %v410, %v416
      %v419 = vunpack.c.l.s4 1966171168
      %v420 = vunpack.c.0.s8 %v419
      %v421 = vlaneseq
      %v422 = vshrl.u32 %v421, 7
      %v423 = vsub.s32 %v420, %v422
      %v424 = vrot.slane %v417, %v423
      %v426 = vadd.f32 %v347, %v424
      %vm427 = vcmask 24576
      %428 = vst.msk [vmem:[%s265] sm:$0x1] %vm427, %v426
      %v429 = vld [vmem:[%s268] sm:$0x1]
      %v431 = vcombine.high %v330, %v330
      %v433 = vsel %vm285, %v330, 0.0
      %v434 = vsel %vm285, %v431, 0.0
      %v435 = vadd.f32 %v433, %v434
      %436 = vadd.xlane.f32.xlu0 %v435
      %v437 = vpop.xlane.xlu0 %436
      %v439 = vlaneseq
      %v440 = vshrl.u32 %v439, 7
      %v441 = vsub.s32 0, %v440
      %v442 = vrot.slane %v437, %v441
      %v443 = vlaneseq
      %v444 = vshrl.u32 %v443, 7
      %v445 = vsub.s32 1, %v444
      %v446 = vrot.slane %v437, %v445
      %v447 = vlaneseq
      %v448 = vshrl.u32 %v447, 7
      %v449 = vsub.s32 2, %v448
      %v450 = vrot.slane %v437, %v449
      %v451 = vlaneseq
      %v452 = vshrl.u32 %v451, 7
      %v453 = vsub.s32 3, %v452
      %v454 = vrot.slane %v437, %v453
      %v455 = vcombine.low %v442, %v446
      %v456 = vcombine.low %v450, %v454
      %v458 = vunpack.c.l.s4 1966171168
      %v459 = vunpack.c.0.s8 %v458
      %v460 = vlaneseq
      %v461 = vshrl.u32 %v460, 7
      %v462 = vsub.s32 %v459, %v461
      %v463 = vrot.slane %v455, %v462
      %v465 = vunpack.c.l.s4 1966171168
      %v466 = vunpack.c.0.s8 %v465
      %v467 = vlaneseq
      %v468 = vshrl.u32 %v467, 7
      %v469 = vsub.s32 %v466, %v468
      %v470 = vrot.slane %v456, %v469
      %v471 = vcombine.low %v463, %v470
      %v473 = vunpack.c.l.s4 1966171168
      %v474 = vunpack.c.0.s8 %v473
      %v475 = vlaneseq
      %v476 = vshrl.u32 %v475, 7
      %v477 = vsub.s32 %v474, %v476
      %v478 = vrot.slane %v471, %v477
      %479 = vset.pattern.permute.xlu0 0
      %480 = vperm.xlu0 %479, %v478
      %v481 = vpop.permute.xlu0 %480
      %v482 = vlaneseq
      %v483 = vshrl.u32 %v482, 7
      %v484 = vsub.s32 %v406, %v483
      %v485 = vrot.slane %v481, %v484
      %v487 = vunpack.c.l.s4 1966171168
      %v488 = vunpack.c.0.s8 %v487
      %v489 = vlaneseq
      %v490 = vshrl.u32 %v489, 7
      %v491 = vsub.s32 %v488, %v490
      %v492 = vrot.slane %v485, %v491
      %v494 = vunpack.c.l.s4 1966171168
      %v495 = vunpack.c.0.s8 %v494
      %v496 = vlaneseq
      %v497 = vshrl.u32 %v496, 7
      %v498 = vsub.s32 %v495, %v497
      %v499 = vrot.slane %v492, %v498
      %v501 = vadd.f32 %v429, %v499
      %502 = vst.msk [vmem:[%s268] sm:$0x1] %vm427, %v501
      %v503 = vld [vmem:[%s271] sm:$0x1]
      %v504 = vsel %vm285, %v345, 0.0
      %v505 = vsel %vm285, %v346, 0.0
      %v506 = vadd.f32 %v504, %v505
      %507 = vadd.xlane.f32.xlu0 %v506
      %v508 = vpop.xlane.xlu0 %507
      %v510 = vlaneseq
      %v511 = vshrl.u32 %v510, 7
      %v512 = vsub.s32 0, %v511
      %v513 = vrot.slane %v508, %v512
      %v514 = vlaneseq
      %v515 = vshrl.u32 %v514, 7
      %v516 = vsub.s32 1, %v515
      %v517 = vrot.slane %v508, %v516
      %v518 = vlaneseq
      %v519 = vshrl.u32 %v518, 7
      %v520 = vsub.s32 2, %v519
      %v521 = vrot.slane %v508, %v520
      %v522 = vlaneseq
      %v523 = vshrl.u32 %v522, 7
      %v524 = vsub.s32 3, %v523
      %v525 = vrot.slane %v508, %v524
      %v526 = vcombine.low %v513, %v517
      %v527 = vcombine.low %v521, %v525
      %v529 = vunpack.c.l.s4 1966171168
      %v530 = vunpack.c.0.s8 %v529
      %v531 = vlaneseq
      %v532 = vshrl.u32 %v531, 7
      %v533 = vsub.s32 %v530, %v532
      %v534 = vrot.slane %v526, %v533
      %v536 = vunpack.c.l.s4 1966171168
      %v537 = vunpack.c.0.s8 %v536
      %v538 = vlaneseq
      %v539 = vshrl.u32 %v538, 7
      %v540 = vsub.s32 %v537, %v539
      %v541 = vrot.slane %v527, %v540
      %v542 = vcombine.low %v534, %v541
      %v544 = vunpack.c.l.s4 1966171168
      %v545 = vunpack.c.0.s8 %v544
      %v546 = vlaneseq
      %v547 = vshrl.u32 %v546, 7
      %v548 = vsub.s32 %v545, %v547
      %v549 = vrot.slane %v542, %v548
      %550 = vset.pattern.permute.xlu0 0
      %551 = vperm.xlu0 %550, %v549
      %v552 = vpop.permute.xlu0 %551
      %v553 = vlaneseq
      %v554 = vshrl.u32 %v553, 7
      %v555 = vsub.s32 %v406, %v554
      %v556 = vrot.slane %v552, %v555
      %v558 = vunpack.c.l.s4 1966171168
      %v559 = vunpack.c.0.s8 %v558
      %v560 = vlaneseq
      %v561 = vshrl.u32 %v560, 7
      %v562 = vsub.s32 %v559, %v561
      %v563 = vrot.slane %v556, %v562
      %v565 = vunpack.c.l.s4 1966171168
      %v566 = vunpack.c.0.s8 %v565
      %v567 = vlaneseq
      %v568 = vshrl.u32 %v567, 7
      %v569 = vsub.s32 %v566, %v568
      %v570 = vrot.slane %v563, %v569
      %v572 = vadd.f32 %v503, %v570
      %573 = vst.msk [vmem:[%s271] sm:$0x1] %vm427, %v572
      %p574 = scmp.lt.s32.totalorder %s20, 1
      %s575 = scalar_select %p574, %s20, 1
      %s576 = scalar_lea.vmem %s2, %s575
      %p577 = scmp.lt.s32.totalorder %s20, 1
      %s578 = scalar_select %p577, %s20, 1
      %s579 = scalar_lea.vmem %s3, %s578
      %p580 = scmp.lt.s32.totalorder %s20, 1
      %s581 = scalar_select %p580, %s20, 1
      %s582 = scalar_lea.vmem %s4, %s581
      // Predicated region
      $region33: #{dice_loss.1} parent=27 // pred_check
        %p583 = pneg %p102
      $region34: #{dice_loss.1} parent=27 // pred_check_branch
        %585 = sbr.rel (%p583) target = $region36
      $region35: #{dice_loss.1} parent=27 // pred_region
        _
      $region36: #{dice_loss.1} parent=27 // pred_fallthru
        _
      // Predicated region
      $region37: #{dice_loss.1} parent=27 // pred_check
        %p586 = pneg %p128
      $region38: #{dice_loss.1} parent=27 // pred_check_branch
        %588 = sbr.rel (%p586) target = $region40
      $region39: #{dice_loss.1} parent=27 // pred_region
        _
      $region40: #{dice_loss.1} parent=27 // pred_fallthru
        _
      // Predicated region
      $region41: #{dice_loss.1} parent=27 // pred_check
        %p589 = pneg %p154
      $region42: #{dice_loss.1} parent=27 // pred_check_branch
        %591 = sbr.rel (%p589) target = $region44
      $region43: #{dice_loss.1} parent=27 // pred_region
        _
      $region44: #{dice_loss.1} parent=27 // pred_fallthru
        _
    $region28: #{dice_loss.1} parent=5 // pred_fallthru
      _
    %p592 = scmp.le.s32.totalorder 2, %s11
    // Predicated region
    $region45: #{dice_loss.1} parent=5 // pred_check
      %p593 = pneg %p592
    $region46: #{dice_loss.1} parent=5 // pred_check_branch
      %595 = sbr.rel (%p593) target = $region48
    $region47: #{dice_loss.1} parent=5 // pred_region
      %s596 = ssub.s32 %s11, 2
      // Predicated region
      $region49: #{dice_loss.1} parent=47 // pred_check
        %p597 = pneg %p108
      $region50: #{dice_loss.1} parent=47 // pred_check_branch
        %599 = sbr.rel (%p597) target = $region52
      $region51: #{dice_loss.1} parent=47 // pred_region
        %p600 = scmp.lt.s32.totalorder %s22, 1
        %s601 = scalar_select %p600, %s22, 1
        %s602 = scalar_lea.vmem %s2, %s601
      $region52: #{dice_loss.1} parent=47 // pred_fallthru
        _
      // Predicated region
      $region53: #{dice_loss.1} parent=47 // pred_check
        %p603 = pneg %p134
      $region54: #{dice_loss.1} parent=47 // pred_check_branch
        %605 = sbr.rel (%p603) target = $region56
      $region55: #{dice_loss.1} parent=47 // pred_region
        %p606 = scmp.lt.s32.totalorder %s22, 1
        %s607 = scalar_select %p606, %s22, 1
        %s608 = scalar_lea.vmem %s3, %s607
      $region56: #{dice_loss.1} parent=47 // pred_fallthru
        _
      // Predicated region
      $region57: #{dice_loss.1} parent=47 // pred_check
        %p609 = pneg %p160
      $region58: #{dice_loss.1} parent=47 // pred_check_branch
        %611 = sbr.rel (%p609) target = $region60
      $region59: #{dice_loss.1} parent=47 // pred_region
        %p612 = scmp.lt.s32.totalorder %s22, 1
        %s613 = scalar_select %p612, %s22, 1
        %s614 = scalar_lea.vmem %s4, %s613
      $region60: #{dice_loss.1} parent=47 // pred_fallthru
        _
    $region48: #{dice_loss.1} parent=5 // pred_fallthru
      _
  $region6: #{dice_loss.1} parent=0 // loop_footer
    %s15 = sadd.s32 1, %s11
  $region7: #{dice_loss.1} parent=0 // loop_footer_branch
    %10 = sbr.rel target = $region3
  $region8: #{dice_loss.1} parent=0 // loop_exit
    _

</llo_original>
